<compile_context>
chip_gen: v6e
topology: v6e:2x2x1
jax: 0.10.0
libtpu: 0.0.40
codegen_flags: <defaults>
</compile_context>

<pallas_src>
import functools

import jax
import jax.numpy as jnp
from jax.experimental import pallas as pl
from jax.experimental.pallas import tpu as pltpu


# ---------------------------------------------------------------------------
# Kernel: both decoder branches fused into one pallas_call.
# ---------------------------------------------------------------------------
def _fused_decoder_kernel(rna_c_ref, atac_c_ref, rna_r_ref, atac_r_ref,
                          w_ref, pv_ref, rna_out_ref, atac_out_ref):
    """Fused rna/atac decoders.

    w_ref (bf16) row layout (width = lane-padded common feature width):
      [0, r1)                : W1 block-diag   (r1 = 2 * input_dim rows)
      [r1, r1+width)         : W2 block-diag
      [r1+width, r1+2*width) : W3 block-diag
      [r1+2w, r1+3w)         : W4 rna   (cols [0, rna_out) nonzero)
      [r1+3w, r1+4w)         : W4 atac  (cols [0, atac_out) nonzero)
    pv_ref (f32, 8 x width) rows: g1, b1, g2, b2, g3, b3, bias_rna, bias_atac.
    """
    x_rna = rna_c_ref[...] + rna_r_ref[...]          # residual add (VPU, f32)
    x_atac = atac_c_ref[...] + atac_r_ref[...]
    batch = x_rna.shape[0]                           # static
    in_dim = x_rna.shape[1]                          # static
    r1 = 2 * in_dim
    width = w_ref.shape[1]
    inv_b = 1.0 / batch

    def mxu(a, row_start, row_len):
        # bf16 MXU matmul, f32 accumulation.
        return jnp.dot(a.astype(jnp.bfloat16),
                       w_ref[row_start:row_start + row_len, :],
                       preferred_element_type=jnp.float32)

    def bn_lrelu(h, g_row, b_row):
        # One-pass batch statistics (biased variance), folded into one
        # per-feature scale/shift.  Padded columns have gamma=beta=0 -> stay 0.
        s1 = jnp.sum(h, axis=0, keepdims=True)
        s2 = jnp.sum(h * h, axis=0, keepdims=True)
        mu = s1 * inv_b
        var = jnp.maximum(s2 * inv_b - mu * mu, 0.0)   # clamp cancellation
        gamma = pv_ref[g_row:g_row + 1, :]
        beta = pv_ref[b_row:b_row + 1, :]
        scale = gamma * jax.lax.rsqrt(var + 1e-5)      # rsqrt -> EUP
        shift = beta - mu * scale
        h = h * scale + shift
        return jnp.where(h >= 0.0, h, 0.2 * h)         # LeakyReLU(0.2)

    # Layer 1: exploit block-diagonal W1 -> two small dots, no in-kernel concat.
    h = mxu(x_rna, 0, in_dim) + mxu(x_atac, in_dim, in_dim)
    h = bn_lrelu(h, 0, 1)
    # Layers 2, 3: single lane-dense (B, width) MXU matmuls.
    h = bn_lrelu(mxu(h, r1, width), 2, 3)
    h = bn_lrelu(mxu(h, r1 + width, width), 4, 5)

    # Final Linear per branch, written directly to the two outputs.
    n_rna = rna_out_ref.shape[1]
    n_atac = atac_out_ref.shape[1]
    out_r = mxu(h, r1 + 2 * width, width)
    out_a = mxu(h, r1 + 3 * width, width)
    rna_out_ref[...] = (out_r[:, :n_rna] + pv_ref[6:7, :n_rna]
                        ).astype(rna_out_ref.dtype)
    atac_out_ref[...] = (out_a[:, :n_atac] + pv_ref[7:8, :n_atac]
                         ).astype(atac_out_ref.dtype)


# ---------------------------------------------------------------------------
# Parameter packing (done once, outside the jitted forward)
# ---------------------------------------------------------------------------
def _round_up(n, m):
    return ((n + m - 1) // m) * m


def pack_fused_params(rna_params, atac_params, rna_output_size, atac_output_size):
    """Build ONE bf16 weight slab + one f32 (8, width) scale/shift/bias pack.

    Each per-decoder tuple follows the PyTorch module (weights pre-transposed
    to (in, out)):
      (w1, b1, g1, be1, w2, b2, g2, be2, w3, b3, g3, be3, w4, b4)
    b1/b2/b3 are intentionally discarded (cancelled by BN mean subtraction).
    """
    (w1r, _b1r, g1r, be1r, w2r, _b2r, g2r, be2r,
     w3r, _b3r, g3r, be3r, w4r, b4r) = rna_params
    (w1a, _b1a, g1a, be1a, w2a, _b2a, g2a, be2a,
     w3a, _b3a, g3a, be3a, w4a, b4a) = atac_params

    in_dim = w1r.shape[0]
    h2 = w1r.shape[1]          # hidden_dim // 2
    hid = w2r.shape[1]         # hidden_dim
    r1 = 2 * in_dim
    assert r1 % 8 == 0, "2 * input_dim must be a sublane multiple"

    width = _round_up(max(2 * h2, 2 * hid, rna_output_size, atac_output_size,
                          128), 128)

    def blk(rows):
        return jnp.zeros((rows, width), jnp.float32)

    # Layer 1 block-diagonal: rna feats -> cols [0,h2), atac -> [h2, 2*h2).
    w1_blk = blk(r1)
    w1_blk = w1_blk.at[:in_dim, :h2].set(w1r)
    w1_blk = w1_blk.at[in_dim:, h2:2 * h2].set(w1a)
    # Layer 2: rna -> cols [0,hid), atac -> [hid, 2*hid).
    w2_blk = blk(width)
    w2_blk = w2_blk.at[:h2, :hid].set(w2r)
    w2_blk = w2_blk.at[h2:2 * h2, hid:2 * hid].set(w2a)
    # Layer 3.
    w3_blk = blk(width)
    w3_blk = w3_blk.at[:hid, :hid].set(w3r)
    w3_blk = w3_blk.at[hid:2 * hid, hid:2 * hid].set(w3a)
    # Final Linear, one block per branch (outputs stored at lane offset 0).
    w4r_blk = blk(width)
    w4r_blk = w4r_blk.at[:hid, :rna_output_size].set(w4r)
    w4a_blk = blk(width)
    w4a_blk = w4a_blk.at[hid:2 * hid, :atac_output_size].set(w4a)

    wslab = jnp.concatenate([w1_blk, w2_blk, w3_blk, w4r_blk, w4a_blk],
                            axis=0).astype(jnp.bfloat16)

    pvec = jnp.zeros((8, width), jnp.float32)
    pvec = pvec.at[0, :h2].set(g1r.reshape(-1))
    pvec = pvec.at[0, h2:2 * h2].set(g1a.reshape(-1))
    pvec = pvec.at[1, :h2].set(be1r.reshape(-1))
    pvec = pvec.at[1, h2:2 * h2].set(be1a.reshape(-1))
    pvec = pvec.at[2, :hid].set(g2r.reshape(-1))
    pvec = pvec.at[2, hid:2 * hid].set(g2a.reshape(-1))
    pvec = pvec.at[3, :hid].set(be2r.reshape(-1))
    pvec = pvec.at[3, hid:2 * hid].set(be2a.reshape(-1))
    pvec = pvec.at[4, :hid].set(g3r.reshape(-1))
    pvec = pvec.at[4, hid:2 * hid].set(g3a.reshape(-1))
    pvec = pvec.at[5, :hid].set(be3r.reshape(-1))
    pvec = pvec.at[5, hid:2 * hid].set(be3a.reshape(-1))
    pvec = pvec.at[6, :rna_output_size].set(b4r.reshape(-1))
    pvec = pvec.at[7, :atac_output_size].set(b4a.reshape(-1))

    return wslab, pvec


# ---------------------------------------------------------------------------
# Forward wrapper — one pallas_call, no wrapper-side concat / slice ops.
# ---------------------------------------------------------------------------
@functools.partial(jax.jit, static_argnums=(6, 7))
def net_concat_decoder_forward(rna_common, atac_common, rna_resid, atac_resid,
                               wslab, pvec, rna_output_size, atac_output_size):
    batch, in_dim = rna_common.shape
    width = wslab.shape[1]
    r1 = 2 * in_dim

    cost = pl.CostEstimate(
        flops=2 * batch * (r1 * width + 4 * width * width),
        transcendentals=3 * width,
        bytes_accessed=(4 * batch * in_dim * 4
                        + wslab.size * wslab.dtype.itemsize
                        + pvec.size * pvec.dtype.itemsize
                        + batch * (rna_output_size + atac_output_size) * 4),
    )

    vmem = pl.BlockSpec(memory_space=pltpu.MemorySpace.VMEM)
    rna_out, atac_out = pl.pallas_call(
        _fused_decoder_kernel,
        out_shape=(jax.ShapeDtypeStruct((batch, rna_output_size), jnp.float32),
                   jax.ShapeDtypeStruct((batch, atac_output_size), jnp.float32)),
        in_specs=[vmem] * 6,
        out_specs=(vmem, vmem),
        cost_estimate=cost,
    )(rna_common, atac_common, rna_resid, atac_resid, wslab, pvec)
    return rna_out, atac_out


# ---------------------------------------------------------------------------
# Parameter init (matches the PyTorch module's parameter shapes)
# ---------------------------------------------------------------------------
def init_decoder_params(key, input_dim, hidden_dim, output_size):
    dims = [input_dim, hidden_dim // 2, hidden_dim, hidden_dim, output_size]
    params = []
    keys = jax.random.split(key, 8)
    for i in range(4):
        fan_in, fan_out = dims[i], dims[i + 1]
        # Linear weight stored pre-transposed (in, out); bias as (1, out).
        w = (jax.random.normal(keys[2 * i], (fan_in, fan_out), jnp.float32)
             * (1.0 / jnp.sqrt(fan_in)))
        b = jax.random.normal(keys[2 * i + 1], (1, fan_out), jnp.float32) * 0.01
        params.extend([w, b])
        if i < 3:
            # BatchNorm1d affine (PyTorch init: gamma=1, beta=0).
            params.extend([jnp.ones((1, fan_out), jnp.float32),
                           jnp.zeros((1, fan_out), jnp.float32)])
    return tuple(params)


# ---------------------------------------------------------------------------
# Pure-JAX reference (mirrors the PyTorch forward, incl. pre-BN biases)
# ---------------------------------------------------------------------------
def reference_forward(rna_common, atac_common, rna_resid, atac_resid,
                      rna_params, atac_params):
    hp = jax.lax.Precision.HIGHEST

    def block(h, w, b, g, be):
        h = jnp.dot(h, w, precision=hp) + b
        mu = jnp.mean(h, axis=0, keepdims=True)
        var = jnp.mean((h - mu) ** 2, axis=0, keepdims=True)
        h = (h - mu) / jnp.sqrt(var + 1e-5)
        h = h * g + be
        return jnp.where(h >= 0, h, 0.2 * h)

    def decoder(x, p):
        (w1, b1, g1, be1, w2, b2, g2, be2, w3, b3, g3, be3, w4, b4) = p
        h = block(x, w1, b1, g1, be1)
        h = block(h, w2, b2, g2, be2)
        h = block(h, w3, b3, g3, be3)
        return jnp.dot(h, w4, precision=hp) + b4

    return (decoder(rna_common + rna_resid, rna_params),
            decoder(atac_common + atac_resid, atac_params))


if __name__ == "__main__":
    # Small, forward-consistent shapes (batch is a multiple of the f32 sublane).
    batch = 8
    input_dim = 32
    hidden_dim = 64            # hidden_dim // 2 = 32
    rna_output_size = 48
    atac_output_size = 40

    key = jax.random.PRNGKey(0)
    k_in, k_rna, k_atac = jax.random.split(key, 3)
    k1, k2, k3, k4 = jax.random.split(k_in, 4)

    rna_common = jax.random.normal(k1, (batch, input_dim), jnp.float32)
    atac_common = jax.random.normal(k2, (batch, input_dim), jnp.float32)
    rna_resid = jax.random.normal(k3, (batch, input_dim), jnp.float32)
    atac_resid = jax.random.normal(k4, (batch, input_dim), jnp.float32)

    rna_params = init_decoder_params(k_rna, input_dim, hidden_dim,
                                     rna_output_size)
    atac_params = init_decoder_params(k_atac, input_dim, hidden_dim,
                                      atac_output_size)

    wslab, pvec = pack_fused_params(rna_params, atac_params,
                                    rna_output_size, atac_output_size)

    rna_out, atac_out = net_concat_decoder_forward(
        rna_common, atac_common, rna_resid, atac_resid,
        wslab, pvec, rna_output_size, atac_output_size)
    jax.block_until_ready((rna_out, atac_out))

    assert rna_out.shape == (batch, rna_output_size)
    assert atac_out.shape == (batch, atac_output_size)

    # Correctness check against a pure-JAX (Precision.HIGHEST) reference of the
    # PyTorch forward.  Tolerance reflects the bf16 MXU path in the kernel.
    rna_ref, atac_ref = reference_forward(
        rna_common, atac_common, rna_resid, atac_resid, rna_params, atac_params)
    assert jnp.allclose(rna_out, rna_ref, rtol=3e-2, atol=3e-2)
    assert jnp.allclose(atac_out, atac_ref, rtol=3e-2, atol=3e-2)

    print("KERNEL_OK")
</pallas_src>

<mosaic_0001>
module attributes {stable_mosaic.version = 11 : i64} {
  func.func @_fused_decoder_kernel(%arg0: memref<8x32xf32, #tpu.memory_space<vmem>>, %arg1: memref<8x32xf32, #tpu.memory_space<vmem>>, %arg2: memref<8x32xf32, #tpu.memory_space<vmem>>, %arg3: memref<8x32xf32, #tpu.memory_space<vmem>>, %arg4: memref<576x128xbf16, #tpu.memory_space<vmem>>, %arg5: memref<8x128xf32, #tpu.memory_space<vmem>>, %arg6: memref<8x48xf32, #tpu.memory_space<vmem>>, %arg7: memref<8x40xf32, #tpu.memory_space<vmem>>) attributes {dimension_semantics = [], scalar_prefetch = 0 : i64, scratch_operands = 0 : i64, tpu.core_type = #tpu.core_type<tc>} {
    %c0 = arith.constant 0 : index
    %c0_0 = arith.constant 0 : index
    %0 = vector.load %arg0[%c0, %c0_0] : memref<8x32xf32, #tpu.memory_space<vmem>>, vector<8x32xf32>
    %c0_1 = arith.constant 0 : index
    %c0_2 = arith.constant 0 : index
    %1 = vector.load %arg2[%c0_1, %c0_2] : memref<8x32xf32, #tpu.memory_space<vmem>>, vector<8x32xf32>
    %2 = arith.addf %0, %1 : vector<8x32xf32>
    %c0_3 = arith.constant 0 : index
    %c0_4 = arith.constant 0 : index
    %3 = vector.load %arg1[%c0_3, %c0_4] : memref<8x32xf32, #tpu.memory_space<vmem>>, vector<8x32xf32>
    %c0_5 = arith.constant 0 : index
    %c0_6 = arith.constant 0 : index
    %4 = vector.load %arg3[%c0_5, %c0_6] : memref<8x32xf32, #tpu.memory_space<vmem>>, vector<8x32xf32>
    %5 = arith.addf %3, %4 : vector<8x32xf32>
    %6 = arith.truncf %2 : vector<8x32xf32> to vector<8x32xbf16>
    %c0_7 = arith.constant 0 : index
    %c0_8 = arith.constant 0 : index
    %7 = vector.load %arg4[%c0_7, %c0_8] : memref<576x128xbf16, #tpu.memory_space<vmem>>, vector<32x128xbf16>
    %cst = arith.constant dense<0.000000e+00> : vector<8x128xf32>
    %8 = tpu.matmul %6, %7, %cst {dimension_numbers = #tpu.dot_dimension_numbers<[1], [0], [0], [1], [0, 0, 1, 1], [], []>} : vector<8x32xbf16>, vector<32x128xbf16>, vector<8x128xf32> -> vector<8x128xf32>
    %9 = arith.truncf %5 : vector<8x32xf32> to vector<8x32xbf16>
    %c32 = arith.constant 32 : index
    %c0_9 = arith.constant 0 : index
    %10 = vector.load %arg4[%c32, %c0_9] : memref<576x128xbf16, #tpu.memory_space<vmem>>, vector<32x128xbf16>
    %cst_10 = arith.constant dense<0.000000e+00> : vector<8x128xf32>
    %11 = tpu.matmul %9, %10, %cst_10 {dimension_numbers = #tpu.dot_dimension_numbers<[1], [0], [0], [1], [0, 0, 1, 1], [], []>} : vector<8x32xbf16>, vector<32x128xbf16>, vector<8x128xf32> -> vector<8x128xf32>
    %12 = arith.addf %8, %11 : vector<8x128xf32>
    %cst_11 = arith.constant dense<0.000000e+00> : vector<128xf32>
    %13 = vector.multi_reduction <add>, %12, %cst_11 [0] : vector<8x128xf32> to vector<128xf32>
    %14 = vector.shape_cast %13 : vector<128xf32> to vector<1x128xf32>
    %15 = arith.mulf %12, %12 : vector<8x128xf32>
    %cst_12 = arith.constant dense<0.000000e+00> : vector<128xf32>
    %16 = vector.multi_reduction <add>, %15, %cst_12 [0] : vector<8x128xf32> to vector<128xf32>
    %17 = vector.shape_cast %16 : vector<128xf32> to vector<1x128xf32>
    %cst_13 = arith.constant 1.250000e-01 : f32
    %18 = vector.broadcast %cst_13 : f32 to vector<1x128xf32>
    %19 = arith.mulf %14, %18 : vector<1x128xf32>
    %cst_14 = arith.constant 1.250000e-01 : f32
    %20 = vector.broadcast %cst_14 : f32 to vector<1x128xf32>
    %21 = arith.mulf %17, %20 : vector<1x128xf32>
    %22 = arith.mulf %19, %19 : vector<1x128xf32>
    %23 = arith.subf %21, %22 : vector<1x128xf32>
    %cst_15 = arith.constant 0.000000e+00 : f32
    %24 = vector.broadcast %cst_15 : f32 to vector<1x128xf32>
    %25 = arith.maximumf %23, %24 : vector<1x128xf32>
    %c0_16 = arith.constant 0 : index
    %c0_17 = arith.constant 0 : index
    %26 = vector.load %arg5[%c0_16, %c0_17] : memref<8x128xf32, #tpu.memory_space<vmem>>, vector<1x128xf32>
    %c1 = arith.constant 1 : index
    %c0_18 = arith.constant 0 : index
    %27 = vector.load %arg5[%c1, %c0_18] : memref<8x128xf32, #tpu.memory_space<vmem>>, vector<1x128xf32>
    %cst_19 = arith.constant 9.99999974E-6 : f32
    %28 = vector.broadcast %cst_19 : f32 to vector<1x128xf32>
    %29 = arith.addf %25, %28 : vector<1x128xf32>
    %30 = math.rsqrt %29 : vector<1x128xf32>
    %31 = arith.mulf %26, %30 : vector<1x128xf32>
    %32 = arith.mulf %19, %31 : vector<1x128xf32>
    %33 = arith.subf %27, %32 : vector<1x128xf32>
    %34 = vector.broadcast %31 : vector<1x128xf32> to vector<8x128xf32>
    %35 = arith.mulf %12, %34 : vector<8x128xf32>
    %36 = vector.broadcast %33 : vector<1x128xf32> to vector<8x128xf32>
    %37 = arith.addf %35, %36 : vector<8x128xf32>
    %cst_20 = arith.constant 0.000000e+00 : f32
    %38 = vector.broadcast %cst_20 : f32 to vector<8x128xf32>
    %39 = arith.cmpf oge, %37, %38 : vector<8x128xf32>
    %cst_21 = arith.constant 2.000000e-01 : f32
    %40 = vector.broadcast %cst_21 : f32 to vector<8x128xf32>
    %41 = arith.mulf %40, %37 : vector<8x128xf32>
    %42 = arith.select %39, %37, %41 : vector<8x128xi1>, vector<8x128xf32>
    %43 = arith.truncf %42 : vector<8x128xf32> to vector<8x128xbf16>
    %c64 = arith.constant 64 : index
    %c0_22 = arith.constant 0 : index
    %44 = vector.load %arg4[%c64, %c0_22] : memref<576x128xbf16, #tpu.memory_space<vmem>>, vector<128x128xbf16>
    %cst_23 = arith.constant dense<0.000000e+00> : vector<8x128xf32>
    %45 = tpu.matmul %43, %44, %cst_23 {dimension_numbers = #tpu.dot_dimension_numbers<[1], [0], [0], [1], [0, 0, 1, 1], [], []>} : vector<8x128xbf16>, vector<128x128xbf16>, vector<8x128xf32> -> vector<8x128xf32>
    %cst_24 = arith.constant dense<0.000000e+00> : vector<128xf32>
    %46 = vector.multi_reduction <add>, %45, %cst_24 [0] : vector<8x128xf32> to vector<128xf32>
    %47 = vector.shape_cast %46 : vector<128xf32> to vector<1x128xf32>
    %48 = arith.mulf %45, %45 : vector<8x128xf32>
    %cst_25 = arith.constant dense<0.000000e+00> : vector<128xf32>
    %49 = vector.multi_reduction <add>, %48, %cst_25 [0] : vector<8x128xf32> to vector<128xf32>
    %50 = vector.shape_cast %49 : vector<128xf32> to vector<1x128xf32>
    %cst_26 = arith.constant 1.250000e-01 : f32
    %51 = vector.broadcast %cst_26 : f32 to vector<1x128xf32>
    %52 = arith.mulf %47, %51 : vector<1x128xf32>
    %cst_27 = arith.constant 1.250000e-01 : f32
    %53 = vector.broadcast %cst_27 : f32 to vector<1x128xf32>
    %54 = arith.mulf %50, %53 : vector<1x128xf32>
    %55 = arith.mulf %52, %52 : vector<1x128xf32>
    %56 = arith.subf %54, %55 : vector<1x128xf32>
    %cst_28 = arith.constant 0.000000e+00 : f32
    %57 = vector.broadcast %cst_28 : f32 to vector<1x128xf32>
    %58 = arith.maximumf %56, %57 : vector<1x128xf32>
    %c2 = arith.constant 2 : index
    %c0_29 = arith.constant 0 : index
    %59 = vector.load %arg5[%c2, %c0_29] : memref<8x128xf32, #tpu.memory_space<vmem>>, vector<1x128xf32>
    %c3 = arith.constant 3 : index
    %c0_30 = arith.constant 0 : index
    %60 = vector.load %arg5[%c3, %c0_30] : memref<8x128xf32, #tpu.memory_space<vmem>>, vector<1x128xf32>
    %cst_31 = arith.constant 9.99999974E-6 : f32
    %61 = vector.broadcast %cst_31 : f32 to vector<1x128xf32>
    %62 = arith.addf %58, %61 : vector<1x128xf32>
    %63 = math.rsqrt %62 : vector<1x128xf32>
    %64 = arith.mulf %59, %63 : vector<1x128xf32>
    %65 = arith.mulf %52, %64 : vector<1x128xf32>
    %66 = arith.subf %60, %65 : vector<1x128xf32>
    %67 = vector.broadcast %64 : vector<1x128xf32> to vector<8x128xf32>
    %68 = arith.mulf %45, %67 : vector<8x128xf32>
    %69 = vector.broadcast %66 : vector<1x128xf32> to vector<8x128xf32>
    %70 = arith.addf %68, %69 : vector<8x128xf32>
    %cst_32 = arith.constant 0.000000e+00 : f32
    %71 = vector.broadcast %cst_32 : f32 to vector<8x128xf32>
    %72 = arith.cmpf oge, %70, %71 : vector<8x128xf32>
    %cst_33 = arith.constant 2.000000e-01 : f32
    %73 = vector.broadcast %cst_33 : f32 to vector<8x128xf32>
    %74 = arith.mulf %73, %70 : vector<8x128xf32>
    %75 = arith.select %72, %70, %74 : vector<8x128xi1>, vector<8x128xf32>
    %76 = arith.truncf %75 : vector<8x128xf32> to vector<8x128xbf16>
    %c192 = arith.constant 192 : index
    %c0_34 = arith.constant 0 : index
    %77 = vector.load %arg4[%c192, %c0_34] : memref<576x128xbf16, #tpu.memory_space<vmem>>, vector<128x128xbf16>
    %cst_35 = arith.constant dense<0.000000e+00> : vector<8x128xf32>
    %78 = tpu.matmul %76, %77, %cst_35 {dimension_numbers = #tpu.dot_dimension_numbers<[1], [0], [0], [1], [0, 0, 1, 1], [], []>} : vector<8x128xbf16>, vector<128x128xbf16>, vector<8x128xf32> -> vector<8x128xf32>
    %cst_36 = arith.constant dense<0.000000e+00> : vector<128xf32>
    %79 = vector.multi_reduction <add>, %78, %cst_36 [0] : vector<8x128xf32> to vector<128xf32>
    %80 = vector.shape_cast %79 : vector<128xf32> to vector<1x128xf32>
    %81 = arith.mulf %78, %78 : vector<8x128xf32>
    %cst_37 = arith.constant dense<0.000000e+00> : vector<128xf32>
    %82 = vector.multi_reduction <add>, %81, %cst_37 [0] : vector<8x128xf32> to vector<128xf32>
    %83 = vector.shape_cast %82 : vector<128xf32> to vector<1x128xf32>
    %cst_38 = arith.constant 1.250000e-01 : f32
    %84 = vector.broadcast %cst_38 : f32 to vector<1x128xf32>
    %85 = arith.mulf %80, %84 : vector<1x128xf32>
    %cst_39 = arith.constant 1.250000e-01 : f32
    %86 = vector.broadcast %cst_39 : f32 to vector<1x128xf32>
    %87 = arith.mulf %83, %86 : vector<1x128xf32>
    %88 = arith.mulf %85, %85 : vector<1x128xf32>
    %89 = arith.subf %87, %88 : vector<1x128xf32>
    %cst_40 = arith.constant 0.000000e+00 : f32
    %90 = vector.broadcast %cst_40 : f32 to vector<1x128xf32>
    %91 = arith.maximumf %89, %90 : vector<1x128xf32>
    %c4 = arith.constant 4 : index
    %c0_41 = arith.constant 0 : index
    %92 = vector.load %arg5[%c4, %c0_41] : memref<8x128xf32, #tpu.memory_space<vmem>>, vector<1x128xf32>
    %c5 = arith.constant 5 : index
    %c0_42 = arith.constant 0 : index
    %93 = vector.load %arg5[%c5, %c0_42] : memref<8x128xf32, #tpu.memory_space<vmem>>, vector<1x128xf32>
    %cst_43 = arith.constant 9.99999974E-6 : f32
    %94 = vector.broadcast %cst_43 : f32 to vector<1x128xf32>
    %95 = arith.addf %91, %94 : vector<1x128xf32>
    %96 = math.rsqrt %95 : vector<1x128xf32>
    %97 = arith.mulf %92, %96 : vector<1x128xf32>
    %98 = arith.mulf %85, %97 : vector<1x128xf32>
    %99 = arith.subf %93, %98 : vector<1x128xf32>
    %100 = vector.broadcast %97 : vector<1x128xf32> to vector<8x128xf32>
    %101 = arith.mulf %78, %100 : vector<8x128xf32>
    %102 = vector.broadcast %99 : vector<1x128xf32> to vector<8x128xf32>
    %103 = arith.addf %101, %102 : vector<8x128xf32>
    %cst_44 = arith.constant 0.000000e+00 : f32
    %104 = vector.broadcast %cst_44 : f32 to vector<8x128xf32>
    %105 = arith.cmpf oge, %103, %104 : vector<8x128xf32>
    %cst_45 = arith.constant 2.000000e-01 : f32
    %106 = vector.broadcast %cst_45 : f32 to vector<8x128xf32>
    %107 = arith.mulf %106, %103 : vector<8x128xf32>
    %108 = arith.select %105, %103, %107 : vector<8x128xi1>, vector<8x128xf32>
    %109 = arith.truncf %108 : vector<8x128xf32> to vector<8x128xbf16>
    %c320 = arith.constant 320 : index
    %c0_46 = arith.constant 0 : index
    %110 = vector.load %arg4[%c320, %c0_46] : memref<576x128xbf16, #tpu.memory_space<vmem>>, vector<128x128xbf16>
    %cst_47 = arith.constant dense<0.000000e+00> : vector<8x128xf32>
    %111 = tpu.matmul %109, %110, %cst_47 {dimension_numbers = #tpu.dot_dimension_numbers<[1], [0], [0], [1], [0, 0, 1, 1], [], []>} : vector<8x128xbf16>, vector<128x128xbf16>, vector<8x128xf32> -> vector<8x128xf32>
    %112 = arith.truncf %108 : vector<8x128xf32> to vector<8x128xbf16>
    %c448 = arith.constant 448 : index
    %c0_48 = arith.constant 0 : index
    %113 = vector.load %arg4[%c448, %c0_48] : memref<576x128xbf16, #tpu.memory_space<vmem>>, vector<128x128xbf16>
    %cst_49 = arith.constant dense<0.000000e+00> : vector<8x128xf32>
    %114 = tpu.matmul %112, %113, %cst_49 {dimension_numbers = #tpu.dot_dimension_numbers<[1], [0], [0], [1], [0, 0, 1, 1], [], []>} : vector<8x128xbf16>, vector<128x128xbf16>, vector<8x128xf32> -> vector<8x128xf32>
    %115 = vector.extract_strided_slice %111 {offsets = [0, 0], sizes = [8, 48], strides = [1, 1]} : vector<8x128xf32> to vector<8x48xf32>
    %c6 = arith.constant 6 : index
    %c0_50 = arith.constant 0 : index
    %116 = vector.load %arg5[%c6, %c0_50] : memref<8x128xf32, #tpu.memory_space<vmem>>, vector<1x48xf32>
    %117 = vector.broadcast %116 : vector<1x48xf32> to vector<8x48xf32>
    %118 = arith.addf %115, %117 : vector<8x48xf32>
    %c0_51 = arith.constant 0 : index
    %c0_52 = arith.constant 0 : index
    %119 = vector.load %arg6[%c0_51, %c0_52] : memref<8x48xf32, #tpu.memory_space<vmem>>, vector<8x48xf32>
    tpu.vector_store %arg6[%c0_51, %c0_52], %118 {strides = array<i32>} : memref<8x48xf32, #tpu.memory_space<vmem>>, vector<8x48xf32>,
    %120 = vector.extract_strided_slice %114 {offsets = [0, 0], sizes = [8, 40], strides = [1, 1]} : vector<8x128xf32> to vector<8x40xf32>
    %c7 = arith.constant 7 : index
    %c0_53 = arith.constant 0 : index
    %121 = vector.load %arg5[%c7, %c0_53] : memref<8x128xf32, #tpu.memory_space<vmem>>, vector<1x40xf32>
    %122 = vector.broadcast %121 : vector<1x40xf32> to vector<8x40xf32>
    %123 = arith.addf %120, %122 : vector<8x40xf32>
    %c0_54 = arith.constant 0 : index
    %c0_55 = arith.constant 0 : index
    %124 = vector.load %arg7[%c0_54, %c0_55] : memref<8x40xf32, #tpu.memory_space<vmem>>, vector<8x40xf32>
    tpu.vector_store %arg7[%c0_54, %c0_55], %123 {strides = array<i32>} : memref<8x40xf32, #tpu.memory_space<vmem>>, vector<8x40xf32>,
    return
  }
}

</mosaic_0001>

<llo_original>
// kernel: net_concat_decoder_forward.1
$region0: #{net_concat_decoder_forward.1}
  #allocation0 [shape = 'u32[]', space=smem, size = 0x4, offset = 0x4, fixed_abs, tag = 'smem constant byte address 0x4 - core index']
  #allocation1 [shape = 'u32[144,128]{1,0:T(1,128)}', space=vmem, size = 0x12000, scoped, tag = 'internal scratch']
  %s0 = inlined_call_operand.hbm [shape: f32[8,32], index: 0, kind: input, shape index: {}]
  %s1 = inlined_call_operand.hbm [shape: f32[8,32], index: 1, kind: input, shape index: {}]
  %s2 = inlined_call_operand.hbm [shape: f32[8,32], index: 2, kind: input, shape index: {}]
  %s3 = inlined_call_operand.hbm [shape: f32[8,32], index: 3, kind: input, shape index: {}]
  %s4 = inlined_call_operand.hbm [shape: bf16[576,128], index: 4, kind: input, shape index: {}]
  %s5 = inlined_call_operand.vmem [shape: f32[8,128], index: 5, kind: input, shape index: {}]
  %s6 = inlined_call_operand.hbm [shape: f32[8,48], index: 6, kind: output, shape index: {0}]
  %s7 = inlined_call_operand.hbm [shape: f32[8,40], index: 7, kind: output, shape index: {1}]
  %8 = xla_tuple %s6, %s7
  %s9 = sld [smem:[#allocation0]]
  $region62: #{net_concat_decoder_forward.1} parent=0
    _
  %s11 = ssub.s32 1, %s9
  %s12 = scalar_select 0, %s11, %s9
  $region1: #{net_concat_decoder_forward.1} parent=0
    #allocation2 [shape = 'u8[4096]{0}', space=vmem, size = 0x1000, scoped, tag = 'input window, operand 0, single buffered']
    #allocation3 [shape = 's32[1]{0}', space=sflag, size = 0x4, scoped, tag = 'scoped memory for net_concat_decoder_forward.1']
    #allocation4 [shape = 's32[1]{0}', space=sflag, size = 0x4, scoped, tag = 'scoped memory for net_concat_decoder_forward.1']
    #allocation5 [shape = 'u8[4096]{0}', space=vmem, size = 0x1000, scoped, tag = 'input window, operand 1, single buffered']
    #allocation6 [shape = 's32[1]{0}', space=sflag, size = 0x4, scoped, tag = 'scoped memory for net_concat_decoder_forward.1']
    #allocation7 [shape = 'u8[4096]{0}', space=vmem, size = 0x1000, scoped, tag = 'input window, operand 2, single buffered']
    #allocation8 [shape = 'u8[4096]{0}', space=vmem, size = 0x1000, scoped, tag = 'input window, operand 3, single buffered']
    #allocation9 [shape = 's32[1]{0}', space=sflag, size = 0x4, scoped, tag = 'scoped memory for net_concat_decoder_forward.1']
    #allocation10 [shape = 'u8[147456]{0}', space=vmem, size = 0x24000, scoped, tag = 'input window, operand 4, single buffered']
    #allocation11 [shape = 'u8[4096]{0}', space=vmem, size = 0x1000, scoped, tag = 'output window, operand 0, single buffered']
    #allocation12 [shape = 'u8[4096]{0}', space=vmem, size = 0x1000, scoped, tag = 'output window, operand 1, single buffered']
    #allocation13 [shape = 's32[1]{0}', space=sflag, size = 0x4, scoped, tag = 'scoped memory for net_concat_decoder_forward.1']
    %13 = vsyncpa [#allocation3], 0
    %14 = vsyncpa [#allocation6], 0
    %15 = vsyncpa [#allocation9], 0
    %16 = vsyncpa [#allocation4], 0
    %17 = vsyncpa [#allocation13], 0
    // Predicated region
    $region2: #{net_concat_decoder_forward.1} parent=1 // pred_check
      _
    $region3: #{net_concat_decoder_forward.1} parent=1 // pred_check_branch
      %19 = sbr.rel (0) target = $region5
    $region4: #{net_concat_decoder_forward.1} parent=1 // pred_region
      %s21 = ssub.s32 128, 128
      %22 = vsyncadd [#allocation3], %s21
      %s24 = sshll.u32 [#allocation2], 4
      %s25 = int_to_ptr.vmem [resolvable:$true] %s24
      %27 = dma.hbm_to_vmem [thread:$0]  %s0, 128, %s25, [#allocation3]
    $region5: #{net_concat_decoder_forward.1} parent=1 // pred_fallthru
      _
    // Predicated region
    $region6: #{net_concat_decoder_forward.1} parent=1 // pred_check
      _
    $region7: #{net_concat_decoder_forward.1} parent=1 // pred_check_branch
      %29 = sbr.rel (0) target = $region9
    $region8: #{net_concat_decoder_forward.1} parent=1 // pred_region
      %s31 = ssub.s32 128, 128
      %32 = vsyncadd [#allocation6], %s31
      %s34 = sshll.u32 [#allocation5], 4
      %s35 = int_to_ptr.vmem [resolvable:$true] %s34
      %37 = dma.hbm_to_vmem [thread:$0]  %s1, 128, %s35, [#allocation6]
    $region9: #{net_concat_decoder_forward.1} parent=1 // pred_fallthru
      _
    // Predicated region
    $region10: #{net_concat_decoder_forward.1} parent=1 // pred_check
      _
    $region11: #{net_concat_decoder_forward.1} parent=1 // pred_check_branch
      %39 = sbr.rel (0) target = $region13
    $region12: #{net_concat_decoder_forward.1} parent=1 // pred_region
      %s41 = ssub.s32 128, 128
      %42 = vsyncadd [#allocation6], %s41
      %s44 = sshll.u32 [#allocation7], 4
      %s45 = int_to_ptr.vmem [resolvable:$true] %s44
      %47 = dma.hbm_to_vmem [thread:$0]  %s2, 128, %s45, [#allocation6]
    $region13: #{net_concat_decoder_forward.1} parent=1 // pred_fallthru
      _
    // Predicated region
    $region14: #{net_concat_decoder_forward.1} parent=1 // pred_check
      _
    $region15: #{net_concat_decoder_forward.1} parent=1 // pred_check_branch
      %49 = sbr.rel (0) target = $region17
    $region16: #{net_concat_decoder_forward.1} parent=1 // pred_region
      %s51 = ssub.s32 128, 128
      %52 = vsyncadd [#allocation9], %s51
      %s54 = sshll.u32 [#allocation8], 4
      %s55 = int_to_ptr.vmem [resolvable:$true] %s54
      %57 = dma.hbm_to_vmem [thread:$0]  %s3, 128, %s55, [#allocation9]
    $region17: #{net_concat_decoder_forward.1} parent=1 // pred_fallthru
      _
    // Predicated region
    $region18: #{net_concat_decoder_forward.1} parent=1 // pred_check
      _
    $region19: #{net_concat_decoder_forward.1} parent=1 // pred_check_branch
      %59 = sbr.rel (0) target = $region21
    $region20: #{net_concat_decoder_forward.1} parent=1 // pred_region
      %s61 = ssub.s32 4608, 4608
      %62 = vsyncadd [#allocation9], %s61
      %s63 = sshll.u32 [#allocation10], 4
      %s64 = int_to_ptr.vmem [resolvable:$true] %s63
      %69 = dma.hbm_to_vmem [thread:$0]  %s4, 4608, %s64, [#allocation9], 64, 64, 4
    $region21: #{net_concat_decoder_forward.1} parent=1 // pred_fallthru
      _
    // Predicated region
    $region22: #{net_concat_decoder_forward.1} parent=1 // pred_check
      _
    $region23: #{net_concat_decoder_forward.1} parent=1 // pred_check_branch
      %71 = sbr.rel (0) target = $region25
    $region24: #{net_concat_decoder_forward.1} parent=1 // pred_region
      _
    $region25: #{net_concat_decoder_forward.1} parent=1 // pred_fallthru
      _
    // Predicated region
    $region26: #{net_concat_decoder_forward.1} parent=1 // pred_check
      _
    $region27: #{net_concat_decoder_forward.1} parent=1 // pred_check_branch
      %73 = sbr.rel (0) target = $region29
    $region28: #{net_concat_decoder_forward.1} parent=1 // pred_region
      %74 = dma.done [#allocation3], 128
    $region29: #{net_concat_decoder_forward.1} parent=1 // pred_fallthru
      _
    // Predicated region
    $region30: #{net_concat_decoder_forward.1} parent=1 // pred_check
      _
    $region31: #{net_concat_decoder_forward.1} parent=1 // pred_check_branch
      %76 = sbr.rel (0) target = $region33
    $region32: #{net_concat_decoder_forward.1} parent=1 // pred_region
      %77 = dma.done [#allocation6], 128
    $region33: #{net_concat_decoder_forward.1} parent=1 // pred_fallthru
      _
    // Predicated region
    $region34: #{net_concat_decoder_forward.1} parent=1 // pred_check
      _
    $region35: #{net_concat_decoder_forward.1} parent=1 // pred_check_branch
      %79 = sbr.rel (0) target = $region37
    $region36: #{net_concat_decoder_forward.1} parent=1 // pred_region
      %80 = dma.done [#allocation6], 128
    $region37: #{net_concat_decoder_forward.1} parent=1 // pred_fallthru
      _
    // Predicated region
    $region38: #{net_concat_decoder_forward.1} parent=1 // pred_check
      _
    $region39: #{net_concat_decoder_forward.1} parent=1 // pred_check_branch
      %82 = sbr.rel (0) target = $region41
    $region40: #{net_concat_decoder_forward.1} parent=1 // pred_region
      %83 = dma.done [#allocation9], 128
    $region41: #{net_concat_decoder_forward.1} parent=1 // pred_fallthru
      _
    // Predicated region
    $region42: #{net_concat_decoder_forward.1} parent=1 // pred_check
      _
    $region43: #{net_concat_decoder_forward.1} parent=1 // pred_check_branch
      %85 = sbr.rel (0) target = $region45
    $region44: #{net_concat_decoder_forward.1} parent=1 // pred_region
      %86 = dma.done [#allocation9], 4608
    $region45: #{net_concat_decoder_forward.1} parent=1 // pred_fallthru
      _
    %v88 = vld [vmem:[#allocation2] sm:$0xff]
    %v89 = vld [vmem:[#allocation7] sm:$0xff]
    %v90 = vadd.f32 %v88, %v89
    %v91 = vld [vmem:[#allocation5] sm:$0xff]
    %v92 = vld [vmem:[#allocation8] sm:$0xff]
    %v93 = vadd.f32 %v91, %v92
    %v94 = vpack.c.bf16 %v90, %v90
    %v95 = vld [vmem:[#allocation10] sm:$0xf]
    %v96 = vld [vmem:[#allocation10 + $0x4] sm:$0xf]
    %v97 = vld [vmem:[#allocation10 + $0x8] sm:$0xf]
    %v98 = vld [vmem:[#allocation10 + $0xc] sm:$0xf]
    %v99 = vpack.c.bf16 %v93, %v93
    %v100 = vld [vmem:[#allocation10 + $0x10] sm:$0xf]
    %v101 = vld [vmem:[#allocation10 + $0x14] sm:$0xf]
    %v102 = vld [vmem:[#allocation10 + $0x18] sm:$0xf]
    %v103 = vld [vmem:[#allocation10 + $0x1c] sm:$0xf]
    %v108 = vunpack.c.l.b16 %v100
    %v109 = vunpack.c.l.b16 %v101
    %v110 = vunpack.c.l.b16 %v102
    %v111 = vunpack.c.l.b16 %v103
    %v112 = vpack.c.b16 %v109, %v108
    %v113 = vpack.c.b16 %v111, %v110
    %vm116 = vcmask 261120
    %v118 = vsel %vm116, %v99, 0
    %120 = vmatprep.subr.bf16.mxu0 0
    %121 = vmatpush1.bf16.msra.mxu0 0
    %122 = vmatprep.subr.bf16.mxu0 0
    %123 = vmatpush1.bf16.msra.mxu0 0
    %124 = vmatprep.subr.bf16.mxu0 0
    %125 = vmatpush1.bf16.msra.mxu0 0
    %126 = vmatprep.subr.bf16.mxu0 0
    %127 = vmatpush1.bf16.msra.mxu0 0
    %128 = vmatprep.subr.bf16.mxu0 0
    %129 = vmatpush1.bf16.msra.mxu0 0
    %130 = vmatprep.subr.bf16.mxu0 0
    %131 = vmatpush1.bf16.msra.mxu0 0
    %132 = vmatprep.subr.bf16.mxu0 0
    %133 = vmatpush1.bf16.msra.mxu0 %v113
    %134 = vmatprep.subr.bf16.mxu0 0
    %135 = vmatpush1.bf16.msra.mxu0 %v112
    %136 = vmatprep.subr.bf16.mxu0 0
    %137 = vmatpush2.bf16.msra.mxu0 0
    %138 = vmatprep.subr.bf16.mxu0 0
    %139 = vmatpush2.bf16.msra.mxu0 0
    %140 = vmatprep.subr.bf16.mxu0 0
    %141 = vmatpush2.bf16.msra.mxu0 0
    %142 = vmatprep.subr.bf16.mxu0 0
    %143 = vmatpush2.bf16.msra.mxu0 0
    %144 = vmatprep.subr.bf16.mxu0 0
    %145 = vmatpush2.bf16.msra.mxu0 0
    %146 = vmatprep.subr.bf16.mxu0 0
    %147 = vmatpush2.bf16.msra.mxu0 0
    %148 = vmatprep.subr.bf16.mxu0 0
    %149 = vmatpush2.bf16.msra.mxu0 0
    %150 = vmatprep.subr.bf16.mxu0 0
    %151 = vmatpush2.bf16.msra.mxu0 0
    %152 = vmatprep.mubr.bf16.mxu0 0
    %153 = vmatmul.mubr.bf16.gmra.mxu0 %v118
    %v154 = vpop.f32.mrf.mxu0
    %v155 = vadd.f32 0.0, %v154
    %v156 = vpop.f32.mrf.mxu0
    %v157 = vpop.f32.mrf.mxu0
    %v158 = vpop.f32.mrf.mxu0
    %159 = vdwg.mxu0
    %v164 = vunpack.c.l.b16 %v95
    %v165 = vunpack.c.l.b16 %v96
    %v166 = vunpack.c.l.b16 %v97
    %v167 = vunpack.c.l.b16 %v98
    %v168 = vpack.c.b16 %v165, %v164
    %v169 = vpack.c.b16 %v167, %v166
    %v173 = vsel %vm116, %v94, 0
    %175 = vmatprep.subr.bf16.mxu0 0
    %176 = vmatpush1.bf16.msra.mxu0 0
    %177 = vmatprep.subr.bf16.mxu0 0
    %178 = vmatpush1.bf16.msra.mxu0 0
    %179 = vmatprep.subr.bf16.mxu0 0
    %180 = vmatpush1.bf16.msra.mxu0 0
    %181 = vmatprep.subr.bf16.mxu0 0
    %182 = vmatpush1.bf16.msra.mxu0 0
    %183 = vmatprep.subr.bf16.mxu0 0
    %184 = vmatpush1.bf16.msra.mxu0 0
    %185 = vmatprep.subr.bf16.mxu0 0
    %186 = vmatpush1.bf16.msra.mxu0 0
    %187 = vmatprep.subr.bf16.mxu0 0
    %188 = vmatpush1.bf16.msra.mxu0 %v169
    %189 = vmatprep.subr.bf16.mxu0 0
    %190 = vmatpush1.bf16.msra.mxu0 %v168
    %191 = vmatprep.subr.bf16.mxu0 0
    %192 = vmatpush2.bf16.msra.mxu0 0
    %193 = vmatprep.subr.bf16.mxu0 0
    %194 = vmatpush2.bf16.msra.mxu0 0
    %195 = vmatprep.subr.bf16.mxu0 0
    %196 = vmatpush2.bf16.msra.mxu0 0
    %197 = vmatprep.subr.bf16.mxu0 0
    %198 = vmatpush2.bf16.msra.mxu0 0
    %199 = vmatprep.subr.bf16.mxu0 0
    %200 = vmatpush2.bf16.msra.mxu0 0
    %201 = vmatprep.subr.bf16.mxu0 0
    %202 = vmatpush2.bf16.msra.mxu0 0
    %203 = vmatprep.subr.bf16.mxu0 0
    %204 = vmatpush2.bf16.msra.mxu0 0
    %205 = vmatprep.subr.bf16.mxu0 0
    %206 = vmatpush2.bf16.msra.mxu0 0
    %207 = vmatprep.mubr.bf16.mxu0 0
    %208 = vmatmul.mubr.bf16.gmra.mxu0 %v173
    %v209 = vpop.f32.mrf.mxu0
    %v210 = vadd.f32 %v155, %v209
    %v211 = vpop.f32.mrf.mxu0
    %v212 = vpop.f32.mrf.mxu0
    %v213 = vpop.f32.mrf.mxu0
    %214 = vdwg.mxu0
    %v215 = vrot.slane %v210, 4
    %v216 = vadd.f32 %v210, %v215
    %v217 = vrot.slane %v216, 2
    %v218 = vadd.f32 %v216, %v217
    %v219 = vrot.slane %v218, 1
    %v220 = vadd.f32 %v218, %v219
    %v221 = vmul.f32 %v210, %v210
    %v222 = vrot.slane %v221, 4
    %v223 = vadd.f32 %v221, %v222
    %v224 = vrot.slane %v223, 2
    %v225 = vadd.f32 %v223, %v224
    %v226 = vrot.slane %v225, 1
    %v227 = vadd.f32 %v225, %v226
    %v228 = vmul.f32 %v220, 0.125
    %v229 = vmul.f32 %v227, 0.125
    %v230 = vmul.f32 %v228, %v228
    %v231 = vsub.f32 %v229, %v230
    %v232 = vmax.f32 %v231, 0.0
    %v233 = vld [vmem:[%s5] sm:$0x1]
    %v234 = vld [vmem:[%s5 + $0x1] sm:$0x1]
    %v235 = vadd.f32 %v232, 1e-05
    %v236 = vrsqrt.pop %v235
    %v237 = vmul.f32 %v233, %v236
    %v238 = vmul.f32 %v228, %v237
    %v239 = vsub.f32 %v234, %v238
    %v240 = vlaneseq
    %v241 = vshrl.u32 %v240, 7
    %v242 = vsub.s32 0, %v241
    %v243 = vrot.slane %v237, %v242
    %v244 = vmul.f32 %v210, %v243
    %v245 = vlaneseq
    %v246 = vshrl.u32 %v245, 7
    %v247 = vsub.s32 0, %v246
    %v248 = vrot.slane %v239, %v247
    %v249 = vadd.f32 %v244, %v248
    %vm250 = vcmp.ge.f32.partialorder %v249, 0.0
    %v251 = vmul.f32 %v249, 0.2
    %v252 = vsel %vm250, %v249, %v251
    %v253 = vpack.c.bf16 %v252, %v252
    %v254 = vld [vmem:[#allocation10 + $0x20] sm:$0xf]
    %v255 = vld [vmem:[#allocation10 + $0x24] sm:$0xf]
    %v256 = vld [vmem:[#allocation10 + $0x28] sm:$0xf]
    %v257 = vld [vmem:[#allocation10 + $0x2c] sm:$0xf]
    %v258 = vld [vmem:[#allocation10 + $0x30] sm:$0xf]
    %v259 = vld [vmem:[#allocation10 + $0x34] sm:$0xf]
    %v260 = vld [vmem:[#allocation10 + $0x38] sm:$0xf]
    %v261 = vld [vmem:[#allocation10 + $0x3c] sm:$0xf]
    %v262 = vld [vmem:[#allocation10 + $0x40] sm:$0xf]
    %v263 = vld [vmem:[#allocation10 + $0x44] sm:$0xf]
    %v264 = vld [vmem:[#allocation10 + $0x48] sm:$0xf]
    %v265 = vld [vmem:[#allocation10 + $0x4c] sm:$0xf]
    %v266 = vld [vmem:[#allocation10 + $0x50] sm:$0xf]
    %v267 = vld [vmem:[#allocation10 + $0x54] sm:$0xf]
    %v268 = vld [vmem:[#allocation10 + $0x58] sm:$0xf]
    %v269 = vld [vmem:[#allocation10 + $0x5c] sm:$0xf]
    %v286 = vunpack.c.l.b16 %v254
    %v287 = vunpack.c.l.b16 %v255
    %v288 = vunpack.c.l.b16 %v256
    %v289 = vunpack.c.l.b16 %v257
    %v290 = vunpack.c.l.b16 %v258
    %v291 = vunpack.c.l.b16 %v259
    %v292 = vunpack.c.l.b16 %v260
    %v293 = vunpack.c.l.b16 %v261
    %v294 = vunpack.c.l.b16 %v262
    %v295 = vunpack.c.l.b16 %v263
    %v296 = vunpack.c.l.b16 %v264
    %v297 = vunpack.c.l.b16 %v265
    %v298 = vunpack.c.l.b16 %v266
    %v299 = vunpack.c.l.b16 %v267
    %v300 = vunpack.c.l.b16 %v268
    %v301 = vunpack.c.l.b16 %v269
    %v302 = vpack.c.b16 %v287, %v286
    %v303 = vpack.c.b16 %v289, %v288
    %v304 = vpack.c.b16 %v291, %v290
    %v305 = vpack.c.b16 %v293, %v292
    %v306 = vpack.c.b16 %v295, %v294
    %v307 = vpack.c.b16 %v297, %v296
    %v308 = vpack.c.b16 %v299, %v298
    %v309 = vpack.c.b16 %v301, %v300
    %318 = vmatprep.subr.bf16.mxu0 0
    %319 = vmatpush1.bf16.msra.mxu0 %v309
    %320 = vmatprep.subr.bf16.mxu0 0
    %321 = vmatpush1.bf16.msra.mxu0 %v308
    %322 = vmatprep.subr.bf16.mxu0 0
    %323 = vmatpush1.bf16.msra.mxu0 %v307
    %324 = vmatprep.subr.bf16.mxu0 0
    %325 = vmatpush1.bf16.msra.mxu0 %v306
    %326 = vmatprep.subr.bf16.mxu0 0
    %327 = vmatpush1.bf16.msra.mxu0 %v305
    %328 = vmatprep.subr.bf16.mxu0 0
    %329 = vmatpush1.bf16.msra.mxu0 %v304
    %330 = vmatprep.subr.bf16.mxu0 0
    %331 = vmatpush1.bf16.msra.mxu0 %v303
    %332 = vmatprep.subr.bf16.mxu0 0
    %333 = vmatpush1.bf16.msra.mxu0 %v302
    %334 = vmatprep.subr.bf16.mxu0 0
    %335 = vmatpush2.bf16.msra.mxu0 0
    %336 = vmatprep.subr.bf16.mxu0 0
    %337 = vmatpush2.bf16.msra.mxu0 0
    %338 = vmatprep.subr.bf16.mxu0 0
    %339 = vmatpush2.bf16.msra.mxu0 0
    %340 = vmatprep.subr.bf16.mxu0 0
    %341 = vmatpush2.bf16.msra.mxu0 0
    %342 = vmatprep.subr.bf16.mxu0 0
    %343 = vmatpush2.bf16.msra.mxu0 0
    %344 = vmatprep.subr.bf16.mxu0 0
    %345 = vmatpush2.bf16.msra.mxu0 0
    %346 = vmatprep.subr.bf16.mxu0 0
    %347 = vmatpush2.bf16.msra.mxu0 0
    %348 = vmatprep.subr.bf16.mxu0 0
    %349 = vmatpush2.bf16.msra.mxu0 0
    %350 = vmatprep.mubr.bf16.mxu0 0
    %351 = vmatmul.mubr.bf16.gmra.mxu0 %v253
    %v352 = vpop.f32.mrf.mxu0
    %v353 = vadd.f32 0.0, %v352
    %v354 = vpop.f32.mrf.mxu0
    %v355 = vpop.f32.mrf.mxu0
    %v356 = vpop.f32.mrf.mxu0
    %357 = vdwg.mxu0
    %v358 = vrot.slane %v353, 4
    %v359 = vadd.f32 %v353, %v358
    %v360 = vrot.slane %v359, 2
    %v361 = vadd.f32 %v359, %v360
    %v362 = vrot.slane %v361, 1
    %v363 = vadd.f32 %v361, %v362
    %v364 = vmul.f32 %v353, %v353
    %v365 = vrot.slane %v364, 4
    %v366 = vadd.f32 %v364, %v365
    %v367 = vrot.slane %v366, 2
    %v368 = vadd.f32 %v366, %v367
    %v369 = vrot.slane %v368, 1
    %v370 = vadd.f32 %v368, %v369
    %v371 = vmul.f32 %v363, 0.125
    %v372 = vmul.f32 %v370, 0.125
    %v373 = vmul.f32 %v371, %v371
    %v374 = vsub.f32 %v372, %v373
    %v375 = vmax.f32 %v374, 0.0
    %v376 = vld [vmem:[%s5 + $0x2] sm:$0x1]
    %v377 = vld [vmem:[%s5 + $0x3] sm:$0x1]
    %v378 = vadd.f32 %v375, 1e-05
    %v379 = vrsqrt.pop %v378
    %v380 = vmul.f32 %v376, %v379
    %v381 = vmul.f32 %v371, %v380
    %v382 = vsub.f32 %v377, %v381
    %v383 = vlaneseq
    %v384 = vshrl.u32 %v383, 7
    %v385 = vsub.s32 0, %v384
    %v386 = vrot.slane %v380, %v385
    %v387 = vmul.f32 %v353, %v386
    %v388 = vlaneseq
    %v389 = vshrl.u32 %v388, 7
    %v390 = vsub.s32 0, %v389
    %v391 = vrot.slane %v382, %v390
    %v392 = vadd.f32 %v387, %v391
    %vm393 = vcmp.ge.f32.partialorder %v392, 0.0
    %v394 = vmul.f32 %v392, 0.2
    %v395 = vsel %vm393, %v392, %v394
    %v396 = vpack.c.bf16 %v395, %v395
    %v397 = vld [vmem:[#allocation10 + $0x60] sm:$0xf]
    %v398 = vld [vmem:[#allocation10 + $0x64] sm:$0xf]
    %v399 = vld [vmem:[#allocation10 + $0x68] sm:$0xf]
    %v400 = vld [vmem:[#allocation10 + $0x6c] sm:$0xf]
    %v401 = vld [vmem:[#allocation10 + $0x70] sm:$0xf]
    %v402 = vld [vmem:[#allocation10 + $0x74] sm:$0xf]
    %v403 = vld [vmem:[#allocation10 + $0x78] sm:$0xf]
    %v404 = vld [vmem:[#allocation10 + $0x7c] sm:$0xf]
    %v405 = vld [vmem:[#allocation10 + $0x80] sm:$0xf]
    %v406 = vld [vmem:[#allocation10 + $0x84] sm:$0xf]
    %v407 = vld [vmem:[#allocation10 + $0x88] sm:$0xf]
    %v408 = vld [vmem:[#allocation10 + $0x8c] sm:$0xf]
    %v409 = vld [vmem:[#allocation10 + $0x90] sm:$0xf]
    %v410 = vld [vmem:[#allocation10 + $0x94] sm:$0xf]
    %v411 = vld [vmem:[#allocation10 + $0x98] sm:$0xf]
    %v412 = vld [vmem:[#allocation10 + $0x9c] sm:$0xf]
    %v429 = vunpack.c.l.b16 %v397
    %v430 = vunpack.c.l.b16 %v398
    %v431 = vunpack.c.l.b16 %v399
    %v432 = vunpack.c.l.b16 %v400
    %v433 = vunpack.c.l.b16 %v401
    %v434 = vunpack.c.l.b16 %v402
    %v435 = vunpack.c.l.b16 %v403
    %v436 = vunpack.c.l.b16 %v404
    %v437 = vunpack.c.l.b16 %v405
    %v438 = vunpack.c.l.b16 %v406
    %v439 = vunpack.c.l.b16 %v407
    %v440 = vunpack.c.l.b16 %v408
    %v441 = vunpack.c.l.b16 %v409
    %v442 = vunpack.c.l.b16 %v410
    %v443 = vunpack.c.l.b16 %v411
    %v444 = vunpack.c.l.b16 %v412
    %v445 = vpack.c.b16 %v430, %v429
    %v446 = vpack.c.b16 %v432, %v431
    %v447 = vpack.c.b16 %v434, %v433
    %v448 = vpack.c.b16 %v436, %v435
    %v449 = vpack.c.b16 %v438, %v437
    %v450 = vpack.c.b16 %v440, %v439
    %v451 = vpack.c.b16 %v442, %v441
    %v452 = vpack.c.b16 %v444, %v443
    %461 = vmatprep.subr.bf16.mxu0 0
    %462 = vmatpush1.bf16.msra.mxu0 %v452
    %463 = vmatprep.subr.bf16.mxu0 0
    %464 = vmatpush1.bf16.msra.mxu0 %v451
    %465 = vmatprep.subr.bf16.mxu0 0
    %466 = vmatpush1.bf16.msra.mxu0 %v450
    %467 = vmatprep.subr.bf16.mxu0 0
    %468 = vmatpush1.bf16.msra.mxu0 %v449
    %469 = vmatprep.subr.bf16.mxu0 0
    %470 = vmatpush1.bf16.msra.mxu0 %v448
    %471 = vmatprep.subr.bf16.mxu0 0
    %472 = vmatpush1.bf16.msra.mxu0 %v447
    %473 = vmatprep.subr.bf16.mxu0 0
    %474 = vmatpush1.bf16.msra.mxu0 %v446
    %475 = vmatprep.subr.bf16.mxu0 0
    %476 = vmatpush1.bf16.msra.mxu0 %v445
    %477 = vmatprep.subr.bf16.mxu0 0
    %478 = vmatpush2.bf16.msra.mxu0 0
    %479 = vmatprep.subr.bf16.mxu0 0
    %480 = vmatpush2.bf16.msra.mxu0 0
    %481 = vmatprep.subr.bf16.mxu0 0
    %482 = vmatpush2.bf16.msra.mxu0 0
    %483 = vmatprep.subr.bf16.mxu0 0
    %484 = vmatpush2.bf16.msra.mxu0 0
    %485 = vmatprep.subr.bf16.mxu0 0
    %486 = vmatpush2.bf16.msra.mxu0 0
    %487 = vmatprep.subr.bf16.mxu0 0
    %488 = vmatpush2.bf16.msra.mxu0 0
    %489 = vmatprep.subr.bf16.mxu0 0
    %490 = vmatpush2.bf16.msra.mxu0 0
    %491 = vmatprep.subr.bf16.mxu0 0
    %492 = vmatpush2.bf16.msra.mxu0 0
    %493 = vmatprep.mubr.bf16.mxu0 0
    %494 = vmatmul.mubr.bf16.gmra.mxu0 %v396
    %v495 = vpop.f32.mrf.mxu0
    %v496 = vadd.f32 0.0, %v495
    %v497 = vpop.f32.mrf.mxu0
    %v498 = vpop.f32.mrf.mxu0
    %v499 = vpop.f32.mrf.mxu0
    %500 = vdwg.mxu0
    %v501 = vrot.slane %v496, 4
    %v502 = vadd.f32 %v496, %v501
    %v503 = vrot.slane %v502, 2
    %v504 = vadd.f32 %v502, %v503
    %v505 = vrot.slane %v504, 1
    %v506 = vadd.f32 %v504, %v505
    %v507 = vmul.f32 %v496, %v496
    %v508 = vrot.slane %v507, 4
    %v509 = vadd.f32 %v507, %v508
    %v510 = vrot.slane %v509, 2
    %v511 = vadd.f32 %v509, %v510
    %v512 = vrot.slane %v511, 1
    %v513 = vadd.f32 %v511, %v512
    %v514 = vmul.f32 %v506, 0.125
    %v515 = vmul.f32 %v513, 0.125
    %v516 = vmul.f32 %v514, %v514
    %v517 = vsub.f32 %v515, %v516
    %v518 = vmax.f32 %v517, 0.0
    %v519 = vld [vmem:[%s5 + $0x4] sm:$0x1]
    %v520 = vld [vmem:[%s5 + $0x5] sm:$0x1]
    %v521 = vadd.f32 %v518, 1e-05
    %v522 = vrsqrt.pop %v521
    %v523 = vmul.f32 %v519, %v522
    %v524 = vmul.f32 %v514, %v523
    %v525 = vsub.f32 %v520, %v524
    %v526 = vlaneseq
    %v527 = vshrl.u32 %v526, 7
    %v528 = vsub.s32 0, %v527
    %v529 = vrot.slane %v523, %v528
    %v530 = vmul.f32 %v496, %v529
    %v531 = vlaneseq
    %v532 = vshrl.u32 %v531, 7
    %v533 = vsub.s32 0, %v532
    %v534 = vrot.slane %v525, %v533
    %v535 = vadd.f32 %v530, %v534
    %vm536 = vcmp.ge.f32.partialorder %v535, 0.0
    %v537 = vmul.f32 %v535, 0.2
    %v538 = vsel %vm536, %v535, %v537
    %v539 = vpack.c.bf16 %v538, %v538
    %v540 = vld [vmem:[#allocation10 + $0xa0] sm:$0xf]
    %v541 = vld [vmem:[#allocation10 + $0xa4] sm:$0xf]
    %v542 = vld [vmem:[#allocation10 + $0xa8] sm:$0xf]
    %v543 = vld [vmem:[#allocation10 + $0xac] sm:$0xf]
    %v544 = vld [vmem:[#allocation10 + $0xb0] sm:$0xf]
    %v545 = vld [vmem:[#allocation10 + $0xb4] sm:$0xf]
    %v546 = vld [vmem:[#allocation10 + $0xb8] sm:$0xf]
    %v547 = vld [vmem:[#allocation10 + $0xbc] sm:$0xf]
    %v548 = vld [vmem:[#allocation10 + $0xc0] sm:$0xf]
    %v549 = vld [vmem:[#allocation10 + $0xc4] sm:$0xf]
    %v550 = vld [vmem:[#allocation10 + $0xc8] sm:$0xf]
    %v551 = vld [vmem:[#allocation10 + $0xcc] sm:$0xf]
    %v552 = vld [vmem:[#allocation10 + $0xd0] sm:$0xf]
    %v553 = vld [vmem:[#allocation10 + $0xd4] sm:$0xf]
    %v554 = vld [vmem:[#allocation10 + $0xd8] sm:$0xf]
    %v555 = vld [vmem:[#allocation10 + $0xdc] sm:$0xf]
    %v572 = vunpack.c.l.b16 %v540
    %v573 = vunpack.c.l.b16 %v541
    %v574 = vunpack.c.l.b16 %v542
    %v575 = vunpack.c.l.b16 %v543
    %v576 = vunpack.c.l.b16 %v544
    %v577 = vunpack.c.l.b16 %v545
    %v578 = vunpack.c.l.b16 %v546
    %v579 = vunpack.c.l.b16 %v547
    %v580 = vunpack.c.l.b16 %v548
    %v581 = vunpack.c.l.b16 %v549
    %v582 = vunpack.c.l.b16 %v550
    %v583 = vunpack.c.l.b16 %v551
    %v584 = vunpack.c.l.b16 %v552
    %v585 = vunpack.c.l.b16 %v553
    %v586 = vunpack.c.l.b16 %v554
    %v587 = vunpack.c.l.b16 %v555
    %v588 = vpack.c.b16 %v573, %v572
    %v589 = vpack.c.b16 %v575, %v574
    %v590 = vpack.c.b16 %v577, %v576
    %v591 = vpack.c.b16 %v579, %v578
    %v592 = vpack.c.b16 %v581, %v580
    %v593 = vpack.c.b16 %v583, %v582
    %v594 = vpack.c.b16 %v585, %v584
    %v595 = vpack.c.b16 %v587, %v586
    %604 = vmatprep.subr.bf16.mxu0 0
    %605 = vmatpush1.bf16.msra.mxu0 %v595
    %606 = vmatprep.subr.bf16.mxu0 0
    %607 = vmatpush1.bf16.msra.mxu0 %v594
    %608 = vmatprep.subr.bf16.mxu0 0
    %609 = vmatpush1.bf16.msra.mxu0 %v593
    %610 = vmatprep.subr.bf16.mxu0 0
    %611 = vmatpush1.bf16.msra.mxu0 %v592
    %612 = vmatprep.subr.bf16.mxu0 0
    %613 = vmatpush1.bf16.msra.mxu0 %v591
    %614 = vmatprep.subr.bf16.mxu0 0
    %615 = vmatpush1.bf16.msra.mxu0 %v590
    %616 = vmatprep.subr.bf16.mxu0 0
    %617 = vmatpush1.bf16.msra.mxu0 %v589
    %618 = vmatprep.subr.bf16.mxu0 0
    %619 = vmatpush1.bf16.msra.mxu0 %v588
    %620 = vmatprep.subr.bf16.mxu0 0
    %621 = vmatpush2.bf16.msra.mxu0 0
    %622 = vmatprep.subr.bf16.mxu0 0
    %623 = vmatpush2.bf16.msra.mxu0 0
    %624 = vmatprep.subr.bf16.mxu0 0
    %625 = vmatpush2.bf16.msra.mxu0 0
    %626 = vmatprep.subr.bf16.mxu0 0
    %627 = vmatpush2.bf16.msra.mxu0 0
    %628 = vmatprep.subr.bf16.mxu0 0
    %629 = vmatpush2.bf16.msra.mxu0 0
    %630 = vmatprep.subr.bf16.mxu0 0
    %631 = vmatpush2.bf16.msra.mxu0 0
    %632 = vmatprep.subr.bf16.mxu0 0
    %633 = vmatpush2.bf16.msra.mxu0 0
    %634 = vmatprep.subr.bf16.mxu0 0
    %635 = vmatpush2.bf16.msra.mxu0 0
    %636 = vmatprep.mubr.bf16.mxu0 0
    %637 = vmatmul.mubr.bf16.gmra.mxu0 %v539
    %v638 = vpop.f32.mrf.mxu0
    %v639 = vadd.f32 0.0, %v638
    %v640 = vpop.f32.mrf.mxu0
    %v641 = vpop.f32.mrf.mxu0
    %v642 = vpop.f32.mrf.mxu0
    %643 = vdwg.mxu0
    %v644 = vld [vmem:[#allocation10 + $0xe0] sm:$0xf]
    %v645 = vld [vmem:[#allocation10 + $0xe4] sm:$0xf]
    %v646 = vld [vmem:[#allocation10 + $0xe8] sm:$0xf]
    %v647 = vld [vmem:[#allocation10 + $0xec] sm:$0xf]
    %v648 = vld [vmem:[#allocation10 + $0xf0] sm:$0xf]
    %v649 = vld [vmem:[#allocation10 + $0xf4] sm:$0xf]
    %v650 = vld [vmem:[#allocation10 + $0xf8] sm:$0xf]
    %v651 = vld [vmem:[#allocation10 + $0xfc] sm:$0xf]
    %v652 = vld [vmem:[#allocation10 + $0x100] sm:$0xf]
    %v653 = vld [vmem:[#allocation10 + $0x104] sm:$0xf]
    %v654 = vld [vmem:[#allocation10 + $0x108] sm:$0xf]
    %v655 = vld [vmem:[#allocation10 + $0x10c] sm:$0xf]
    %v656 = vld [vmem:[#allocation10 + $0x110] sm:$0xf]
    %v657 = vld [vmem:[#allocation10 + $0x114] sm:$0xf]
    %v658 = vld [vmem:[#allocation10 + $0x118] sm:$0xf]
    %v659 = vld [vmem:[#allocation10 + $0x11c] sm:$0xf]
    %v676 = vunpack.c.l.b16 %v644
    %v677 = vunpack.c.l.b16 %v645
    %v678 = vunpack.c.l.b16 %v646
    %v679 = vunpack.c.l.b16 %v647
    %v680 = vunpack.c.l.b16 %v648
    %v681 = vunpack.c.l.b16 %v649
    %v682 = vunpack.c.l.b16 %v650
    %v683 = vunpack.c.l.b16 %v651
    %v684 = vunpack.c.l.b16 %v652
    %v685 = vunpack.c.l.b16 %v653
    %v686 = vunpack.c.l.b16 %v654
    %v687 = vunpack.c.l.b16 %v655
    %v688 = vunpack.c.l.b16 %v656
    %v689 = vunpack.c.l.b16 %v657
    %v690 = vunpack.c.l.b16 %v658
    %v691 = vunpack.c.l.b16 %v659
    %v692 = vpack.c.b16 %v677, %v676
    %v693 = vpack.c.b16 %v679, %v678
    %v694 = vpack.c.b16 %v681, %v680
    %v695 = vpack.c.b16 %v683, %v682
    %v696 = vpack.c.b16 %v685, %v684
    %v697 = vpack.c.b16 %v687, %v686
    %v698 = vpack.c.b16 %v689, %v688
    %v699 = vpack.c.b16 %v691, %v690
    %708 = vmatprep.subr.bf16.mxu0 0
    %709 = vmatpush1.bf16.msra.mxu0 %v699
    %710 = vmatprep.subr.bf16.mxu0 0
    %711 = vmatpush1.bf16.msra.mxu0 %v698
    %712 = vmatprep.subr.bf16.mxu0 0
    %713 = vmatpush1.bf16.msra.mxu0 %v697
    %714 = vmatprep.subr.bf16.mxu0 0
    %715 = vmatpush1.bf16.msra.mxu0 %v696
    %716 = vmatprep.subr.bf16.mxu0 0
    %717 = vmatpush1.bf16.msra.mxu0 %v695
    %718 = vmatprep.subr.bf16.mxu0 0
    %719 = vmatpush1.bf16.msra.mxu0 %v694
    %720 = vmatprep.subr.bf16.mxu0 0
    %721 = vmatpush1.bf16.msra.mxu0 %v693
    %722 = vmatprep.subr.bf16.mxu0 0
    %723 = vmatpush1.bf16.msra.mxu0 %v692
    %724 = vmatprep.subr.bf16.mxu0 0
    %725 = vmatpush2.bf16.msra.mxu0 0
    %726 = vmatprep.subr.bf16.mxu0 0
    %727 = vmatpush2.bf16.msra.mxu0 0
    %728 = vmatprep.subr.bf16.mxu0 0
    %729 = vmatpush2.bf16.msra.mxu0 0
    %730 = vmatprep.subr.bf16.mxu0 0
    %731 = vmatpush2.bf16.msra.mxu0 0
    %732 = vmatprep.subr.bf16.mxu0 0
    %733 = vmatpush2.bf16.msra.mxu0 0
    %734 = vmatprep.subr.bf16.mxu0 0
    %735 = vmatpush2.bf16.msra.mxu0 0
    %736 = vmatprep.subr.bf16.mxu0 0
    %737 = vmatpush2.bf16.msra.mxu0 0
    %738 = vmatprep.subr.bf16.mxu0 0
    %739 = vmatpush2.bf16.msra.mxu0 0
    %740 = vmatprep.mubr.bf16.mxu0 0
    %741 = vmatmul.mubr.bf16.gmra.mxu0 %v539
    %v742 = vpop.f32.mrf.mxu0
    %v743 = vadd.f32 0.0, %v742
    %v744 = vpop.f32.mrf.mxu0
    %v745 = vpop.f32.mrf.mxu0
    %v746 = vpop.f32.mrf.mxu0
    %747 = vdwg.mxu0
    %v748 = vld [vmem:[%s5 + $0x6] sm:$0x1]
    %v749 = vlaneseq
    %v750 = vshrl.u32 %v749, 7
    %v751 = vsub.s32 0, %v750
    %v752 = vrot.slane %v748, %v751
    %v753 = vadd.f32 %v639, %v752
    %vm754 = vcmask 392192
    %755 = vst.msk [vmem:[#allocation11] sm:$0xff] %vm754, %v753
    %v756 = vld [vmem:[%s5 + $0x7] sm:$0x1]
    %v757 = vlaneseq
    %v758 = vshrl.u32 %v757, 7
    %v759 = vsub.s32 0, %v758
    %v760 = vrot.slane %v756, %v759
    %v761 = vadd.f32 %v743, %v760
    %vm762 = vcmask 326656
    %763 = vst.msk [vmem:[#allocation12] sm:$0xff] %vm762, %v761
    // Predicated region
    $region46: #{net_concat_decoder_forward.1} parent=1 // pred_check
      _
    $region47: #{net_concat_decoder_forward.1} parent=1 // pred_check_branch
      %765 = sbr.rel (0) target = $region49
    $region48: #{net_concat_decoder_forward.1} parent=1 // pred_region
      %s767 = ssub.s32 128, 128
      %768 = vsyncadd [#allocation4], %s767
      %s770 = sshll.u32 [#allocation11], 4
      %s771 = int_to_ptr.vmem [resolvable:$true] %s770
      %773 = dma.vmem_to_hbm [thread:$0]  %s771, 128, %s6, [#allocation4]
    $region49: #{net_concat_decoder_forward.1} parent=1 // pred_fallthru
      _
    // Predicated region
    $region50: #{net_concat_decoder_forward.1} parent=1 // pred_check
      _
    $region51: #{net_concat_decoder_forward.1} parent=1 // pred_check_branch
      %775 = sbr.rel (0) target = $region53
    $region52: #{net_concat_decoder_forward.1} parent=1 // pred_region
      %s777 = ssub.s32 128, 128
      %778 = vsyncadd [#allocation13], %s777
      %s780 = sshll.u32 [#allocation12], 4
      %s781 = int_to_ptr.vmem [resolvable:$true] %s780
      %783 = dma.vmem_to_hbm [thread:$0]  %s781, 128, %s7, [#allocation13]
    $region53: #{net_concat_decoder_forward.1} parent=1 // pred_fallthru
      _
    // Predicated region
    $region54: #{net_concat_decoder_forward.1} parent=1 // pred_check
      _
    $region55: #{net_concat_decoder_forward.1} parent=1 // pred_check_branch
      %785 = sbr.rel (0) target = $region57
    $region56: #{net_concat_decoder_forward.1} parent=1 // pred_region
      %786 = dma.done [#allocation4], 128
    $region57: #{net_concat_decoder_forward.1} parent=1 // pred_fallthru
      _
    // Predicated region
    $region58: #{net_concat_decoder_forward.1} parent=1 // pred_check
      _
    $region59: #{net_concat_decoder_forward.1} parent=1 // pred_check_branch
      %788 = sbr.rel (0) target = $region61
    $region60: #{net_concat_decoder_forward.1} parent=1 // pred_region
      %789 = dma.done [#allocation13], 128
    $region61: #{net_concat_decoder_forward.1} parent=1 // pred_fallthru
      _
    %790 = vsyncpa [#allocation3], 1
    %791 = vsyncpa [#allocation6], 1
    %792 = vsyncpa [#allocation9], 1
    %793 = vsyncpa [#allocation4], 1
    %794 = vsyncpa [#allocation13], 1

</llo_original>
